<compile_context>
chip_gen: v5e
topology: v5e:2x2
jax: 0.10.0
libtpu: 0.0.40
codegen_flags: <defaults>
</compile_context>

<pallas_src>
import jax
import jax.numpy as jnp
from jax import lax
from jax.experimental import pallas as pl
from jax.experimental.pallas import tpu as pltpu


def make_scdown_kernel(c2, H, W):
    N = H * W

    def kernel(x_ref, w1_ref, b1_ref, w2_ref, b2_ref, m_ref, o_ref):
        # ---- cv1: 1x1 conv + folded BN (one lane-dense bf16 MXU matmul) ----
        xb = x_ref[...].astype(jnp.bfloat16)                     # (C1, N)
        y = jnp.dot(w1_ref[...], xb, preferred_element_type=jnp.float32)
        y = y + b1_ref[...]                                      # (C2, N)
        # SiLU: x * sigmoid(x); reciprocal on the EUP slot.
        y = y * pl.reciprocal(1.0 + jnp.exp(-y), approx=True)

        # ---- boundary masks (precomputed on host, multiplicative {0,1}) ----
        mL = m_ref[0:1, :]        # valid left  neighbour (ix >= 1)
        mR = m_ref[1:2, :]        # valid right neighbour (ix <= W-2)
        mT = m_ref[2:3, :]        # valid upper neighbour (iy >= 1)
        mB = m_ref[3:4, :]        # valid lower neighbour (iy <= H-2)

        # ---- cv2: depthwise 3x3 (stride-1 over the flat lane axis) ----
        # Lanes are the row-major flatten of (H, W); neighbours are uniform
        # lane shifts.  pltpu.roll(a, s)[n] = a[n - s]; roll wraps circularly,
        # but every wrapped lane is exactly a masked (zero-padding) lane.
        cL = pltpu.roll(y, 1, axis=1) * mL                 # y at (iy, ix-1)
        cR = pltpu.roll(y, N - 1, axis=1) * mR             # y at (iy, ix+1)

        w2 = w2_ref[...]                                   # (C2, 9), t = ky*3+kx
        def w(t):
            return w2[:, t:t + 1]                          # (C2, 1) lane-broadcast

        row0 = w(0) * cL + w(1) * y + w(2) * cR            # ky = 0 column sums
        row1 = w(3) * cL + w(4) * y + w(5) * cR            # ky = 1
        row2 = w(6) * cL + w(7) * y + w(8) * cR            # ky = 2

        out = (pltpu.roll(row0, W, axis=1) * mT            # row iy-1
               + row1                                      # row iy
               + pltpu.roll(row2, N - W, axis=1) * mB)     # row iy+1
        out = out + b2_ref[...]

        # Full-resolution conv result; the stride-2 subsample is a tiny
        # strided slice outside the kernel (keeps this store lane-dense).
        o_ref[...] = out.astype(o_ref.dtype)               # (C2, N) bf16

    return kernel


def _vmem_limit_bytes(c1, c2, N):
    x_buf = 2 * c1 * N * 4            # f32 input block, double-buffered
    o_buf = 2 * c2 * N * 2            # bf16 output block, double-buffered
    tmp = 8 * c2 * N * 4              # y + shifted copies + row sums (f32)
    misc = c2 * c1 * 2 + 2 * c2 * 4 + c2 * 9 * 4 + 4 * N * 4
    est = x_buf + o_buf + tmp + misc
    # Clamp to 48 MiB: safe on v7x (64 MiB physical VMEM), generous on v5e/v6e.
    return int(min(48 * 2 ** 20, max(32 * 2 ** 20, int(1.25 * est))))


def scdown_forward(x, params):
    """x: (B, C1, H, W) float32; params: folded (w1, b1, w2, b2).

    Returns (B, C2, H//2, W//2) in bfloat16 (halves writeback traffic)."""
    B, c1, H, W = x.shape
    w1, b1, w2, b2 = params
    c2 = w1.shape[0]
    assert H % 2 == 0 and W % 2 == 0, "SCDown (k=3, s=2) kernel needs even H, W"
    Ho, Wo = H // 2, W // 2
    N = H * W

    # Natural NCHW layout, free reshape only (no repack pass over x).
    xr = x.reshape(B, c1, N)
    w1b = w1.astype(jnp.bfloat16)

    # Boundary masks, invariant across the grid: [left, right, top, bottom].
    ix = jnp.arange(N, dtype=jnp.int32) % W
    iy = jnp.arange(N, dtype=jnp.int32) // W
    masks = jnp.stack([ix >= 1, ix <= W - 2, iy >= 1, iy <= H - 2]).astype(jnp.float32)

    kernel = make_scdown_kernel(c2, H, W)
    out_flat = pl.pallas_call(
        kernel,
        out_shape=jax.ShapeDtypeStruct((B, c2, N), jnp.bfloat16),
        grid=(B,),
        in_specs=[
            pl.BlockSpec((pl.Squeezed(), c1, N), lambda b: (b, 0, 0)),  # x (f32)
            pl.BlockSpec((c2, c1), lambda b: (0, 0)),                   # cv1 weight (bf16)
            pl.BlockSpec((c2, 1), lambda b: (0, 0)),                    # cv1 bias
            pl.BlockSpec((c2, 9), lambda b: (0, 0)),                    # cv2 depthwise taps
            pl.BlockSpec((c2, 1), lambda b: (0, 0)),                    # cv2 bias
            pl.BlockSpec((4, N), lambda b: (0, 0)),                     # boundary masks
        ],
        out_specs=pl.BlockSpec((pl.Squeezed(), c2, N), lambda b: (b, 0, 0)),
        compiler_params=pltpu.CompilerParams(
            dimension_semantics=("parallel",),
            vmem_limit_bytes=_vmem_limit_bytes(c1, c2, N)),
    )(xr, w1b, b1, w2, b2, masks)

    # Stride-2 spatial subsample of the (small) full-resolution conv output.
    out_full = out_flat.reshape(B, c2, H, W)
    return out_full[:, :, ::2, ::2]                  # (B, C2, Ho, Wo) bf16


def scdown_reference(x, params):
    """Pure-JAX reference (same folded-BN eval-mode semantics), f32."""
    w1, b1, w2, b2 = params
    c2 = w1.shape[0]
    y = jnp.einsum('oc,bchw->bohw', w1, x) + b1.reshape(1, c2, 1, 1)
    y = y * jax.nn.sigmoid(y)                      # SiLU
    w2k = w2.reshape(c2, 1, 3, 3)
    out = lax.conv_general_dilated(
        y, w2k, window_strides=(2, 2), padding=((1, 1), (1, 1)),
        dimension_numbers=('NCHW', 'OIHW', 'NCHW'),
        feature_group_count=c2)
    return out + b2.reshape(1, c2, 1, 1)


def _fold_bn(weight_2d, gamma, beta, mean, var, eps=1e-3):
    """Fold eval-mode BatchNorm into conv weight/bias (per out-channel)."""
    s = gamma / jnp.sqrt(var + eps)
    w = weight_2d * s[:, None]
    b = (beta - mean * s)[:, None]
    return w.astype(jnp.float32), b.astype(jnp.float32)


def init_params(key, c1, c2):
    ks = jax.random.split(key, 4)

    def bn(k, c):
        k0, k1, k2, k3 = jax.random.split(k, 4)
        gamma = 1.0 + 0.1 * jax.random.normal(k0, (c,))
        beta = 0.1 * jax.random.normal(k1, (c,))
        mean = 0.1 * jax.random.normal(k2, (c,))
        var = 1.0 + 0.1 * jnp.abs(jax.random.normal(k3, (c,)))
        return gamma, beta, mean, var

    # cv1: Conv2d(c1, c2, 1, bias=False) -> weight (c2, c1, 1, 1)
    w1_raw = 0.05 * jax.random.normal(ks[0], (c2, c1))
    w1, b1 = _fold_bn(w1_raw, *bn(ks[1], c2))

    # cv2: depthwise Conv2d(c2, c2, 3, stride=2, pad=1, groups=c2, bias=False)
    #      -> weight (c2, 1, 3, 3), flattened to (c2, 9) with tap = ky*3+kx
    w2_raw = 0.1 * jax.random.normal(ks[2], (c2, 9))
    w2, b2 = _fold_bn(w2_raw, *bn(ks[3], c2))

    return w1, b1, w2, b2


if __name__ == "__main__":
    B, c1, c2, H, W = 2, 32, 32, 16, 16

    key = jax.random.PRNGKey(0)
    kx, kp = jax.random.split(key)
    x = jax.random.normal(kx, (B, c1, H, W), dtype=jnp.float32)
    params = init_params(kp, c1, c2)

    fwd = jax.jit(scdown_forward)
    out = fwd(x, params)
    jax.block_until_ready(out)
    assert out.shape == (B, c2, H // 2, W // 2)

    ref = scdown_reference(x, params)
    err = float(jnp.max(jnp.abs(out.astype(jnp.float32) - ref)))
    assert err < 3e-2, f"max abs error vs reference: {err}"
    print("KERNEL_OK")
</pallas_src>

<mosaic_0001>
module attributes {stable_mosaic.version = 11 : i64} {
  func.func @kernel(%arg0: i32, %arg1: memref<1x32x256xf32, #tpu.memory_space<vmem>>, %arg2: memref<32x32xbf16, #tpu.memory_space<vmem>>, %arg3: memref<32x1xf32, #tpu.memory_space<vmem>>, %arg4: memref<32x9xf32, #tpu.memory_space<vmem>>, %arg5: memref<32x1xf32, #tpu.memory_space<vmem>>, %arg6: memref<4x256xf32, #tpu.memory_space<vmem>>, %arg7: memref<1x32x256xbf16, #tpu.memory_space<vmem>>) attributes {dimension_semantics = [#tpu.dimension_semantics<parallel>], iteration_bounds = array<i64: 2>, scalar_prefetch = 0 : i64, scratch_operands = 0 : i64, tpu.core_type = #tpu.core_type<tc>, window_params = [{transform_indices = @transform_0, window_bounds = array<i64: 1, 32, 256>}, {pipeline_mode = #tpu.pipeline_mode<synchronous>, transform_indices = @transform_1, window_bounds = array<i64: 32, 32>}, {pipeline_mode = #tpu.pipeline_mode<synchronous>, transform_indices = @transform_2, window_bounds = array<i64: 32, 1>}, {pipeline_mode = #tpu.pipeline_mode<synchronous>, transform_indices = @transform_3, window_bounds = array<i64: 32, 9>}, {pipeline_mode = #tpu.pipeline_mode<synchronous>, transform_indices = @transform_4, window_bounds = array<i64: 32, 1>}, {pipeline_mode = #tpu.pipeline_mode<synchronous>, transform_indices = @transform_5, window_bounds = array<i64: 4, 256>}, {transform_indices = @transform_6, window_bounds = array<i64: 1, 32, 256>}]} {
    %c0 = arith.constant 0 : index
    %c0_0 = arith.constant 0 : index
    %c0_1 = arith.constant 0 : index
    %0 = vector.load %arg1[%c0, %c0_0, %c0_1] : memref<1x32x256xf32, #tpu.memory_space<vmem>>, vector<1x32x256xf32>
    %1 = vector.shape_cast %0 : vector<1x32x256xf32> to vector<32x256xf32>
    %2 = arith.truncf %1 : vector<32x256xf32> to vector<32x256xbf16>
    %c0_2 = arith.constant 0 : index
    %c0_3 = arith.constant 0 : index
    %3 = vector.load %arg2[%c0_2, %c0_3] : memref<32x32xbf16, #tpu.memory_space<vmem>>, vector<32x32xbf16>
    %cst = arith.constant dense<0.000000e+00> : vector<32x256xf32>
    %4 = tpu.matmul %3, %2, %cst {dimension_numbers = #tpu.dot_dimension_numbers<[1], [0], [0], [1], [0, 0, 1, 1], [], []>} : vector<32x32xbf16>, vector<32x256xbf16>, vector<32x256xf32> -> vector<32x256xf32>
    %c0_4 = arith.constant 0 : index
    %c0_5 = arith.constant 0 : index
    %5 = vector.load %arg3[%c0_4, %c0_5] : memref<32x1xf32, #tpu.memory_space<vmem>>, vector<32x1xf32>
    %6 = vector.broadcast %5 : vector<32x1xf32> to vector<32x256xf32>
    %7 = arith.addf %4, %6 : vector<32x256xf32>
    %cst_6 = arith.constant 0.000000e+00 : f32
    %8 = vector.broadcast %cst_6 : f32 to vector<32x256xf32>
    %9 = arith.subf %8, %7 : vector<32x256xf32>
    %10 = math.exp %9 : vector<32x256xf32>
    %cst_7 = arith.constant 1.000000e+00 : f32
    %11 = vector.broadcast %cst_7 : f32 to vector<32x256xf32>
    %12 = arith.addf %11, %10 : vector<32x256xf32>
    %13 = tpu.reciprocal %12 {approx = true} : vector<32x256xf32> -> vector<32x256xf32>
    %14 = arith.mulf %7, %13 : vector<32x256xf32>
    %c0_8 = arith.constant 0 : index
    %c0_9 = arith.constant 0 : index
    %15 = vector.load %arg6[%c0_8, %c0_9] : memref<4x256xf32, #tpu.memory_space<vmem>>, vector<1x256xf32>
    %c1 = arith.constant 1 : index
    %c0_10 = arith.constant 0 : index
    %16 = vector.load %arg6[%c1, %c0_10] : memref<4x256xf32, #tpu.memory_space<vmem>>, vector<1x256xf32>
    %c2 = arith.constant 2 : index
    %c0_11 = arith.constant 0 : index
    %17 = vector.load %arg6[%c2, %c0_11] : memref<4x256xf32, #tpu.memory_space<vmem>>, vector<1x256xf32>
    %c3 = arith.constant 3 : index
    %c0_12 = arith.constant 0 : index
    %18 = vector.load %arg6[%c3, %c0_12] : memref<4x256xf32, #tpu.memory_space<vmem>>, vector<1x256xf32>
    %c1_i32 = arith.constant 1 : i32
    %19 = tpu.dynamic_rotate %14 by %c1_i32 dim 1 : vector<32x256xf32>, i32 -> vector<32x256xf32>
    %20 = vector.broadcast %15 : vector<1x256xf32> to vector<32x256xf32>
    %21 = arith.mulf %19, %20 : vector<32x256xf32>
    %c255_i32 = arith.constant 255 : i32
    %22 = tpu.dynamic_rotate %14 by %c255_i32 dim 1 : vector<32x256xf32>, i32 -> vector<32x256xf32>
    %23 = vector.broadcast %16 : vector<1x256xf32> to vector<32x256xf32>
    %24 = arith.mulf %22, %23 : vector<32x256xf32>
    %c0_13 = arith.constant 0 : index
    %c0_14 = arith.constant 0 : index
    %25 = vector.load %arg4[%c0_13, %c0_14] : memref<32x9xf32, #tpu.memory_space<vmem>>, vector<32x9xf32>
    %26 = vector.extract_strided_slice %25 {offsets = [0, 0], sizes = [32, 1], strides = [1, 1]} : vector<32x9xf32> to vector<32x1xf32>
    %27 = vector.broadcast %26 : vector<32x1xf32> to vector<32x256xf32>
    %28 = arith.mulf %27, %21 : vector<32x256xf32>
    %29 = vector.extract_strided_slice %25 {offsets = [0, 1], sizes = [32, 1], strides = [1, 1]} : vector<32x9xf32> to vector<32x1xf32>
    %30 = vector.broadcast %29 : vector<32x1xf32> to vector<32x256xf32>
    %31 = arith.mulf %30, %14 : vector<32x256xf32>
    %32 = arith.addf %28, %31 : vector<32x256xf32>
    %33 = vector.extract_strided_slice %25 {offsets = [0, 2], sizes = [32, 1], strides = [1, 1]} : vector<32x9xf32> to vector<32x1xf32>
    %34 = vector.broadcast %33 : vector<32x1xf32> to vector<32x256xf32>
    %35 = arith.mulf %34, %24 : vector<32x256xf32>
    %36 = arith.addf %32, %35 : vector<32x256xf32>
    %37 = vector.extract_strided_slice %25 {offsets = [0, 3], sizes = [32, 1], strides = [1, 1]} : vector<32x9xf32> to vector<32x1xf32>
    %38 = vector.broadcast %37 : vector<32x1xf32> to vector<32x256xf32>
    %39 = arith.mulf %38, %21 : vector<32x256xf32>
    %40 = vector.extract_strided_slice %25 {offsets = [0, 4], sizes = [32, 1], strides = [1, 1]} : vector<32x9xf32> to vector<32x1xf32>
    %41 = vector.broadcast %40 : vector<32x1xf32> to vector<32x256xf32>
    %42 = arith.mulf %41, %14 : vector<32x256xf32>
    %43 = arith.addf %39, %42 : vector<32x256xf32>
    %44 = vector.extract_strided_slice %25 {offsets = [0, 5], sizes = [32, 1], strides = [1, 1]} : vector<32x9xf32> to vector<32x1xf32>
    %45 = vector.broadcast %44 : vector<32x1xf32> to vector<32x256xf32>
    %46 = arith.mulf %45, %24 : vector<32x256xf32>
    %47 = arith.addf %43, %46 : vector<32x256xf32>
    %48 = vector.extract_strided_slice %25 {offsets = [0, 6], sizes = [32, 1], strides = [1, 1]} : vector<32x9xf32> to vector<32x1xf32>
    %49 = vector.broadcast %48 : vector<32x1xf32> to vector<32x256xf32>
    %50 = arith.mulf %49, %21 : vector<32x256xf32>
    %51 = vector.extract_strided_slice %25 {offsets = [0, 7], sizes = [32, 1], strides = [1, 1]} : vector<32x9xf32> to vector<32x1xf32>
    %52 = vector.broadcast %51 : vector<32x1xf32> to vector<32x256xf32>
    %53 = arith.mulf %52, %14 : vector<32x256xf32>
    %54 = arith.addf %50, %53 : vector<32x256xf32>
    %55 = vector.extract_strided_slice %25 {offsets = [0, 8], sizes = [32, 1], strides = [1, 1]} : vector<32x9xf32> to vector<32x1xf32>
    %56 = vector.broadcast %55 : vector<32x1xf32> to vector<32x256xf32>
    %57 = arith.mulf %56, %24 : vector<32x256xf32>
    %58 = arith.addf %54, %57 : vector<32x256xf32>
    %c16_i32 = arith.constant 16 : i32
    %59 = tpu.dynamic_rotate %36 by %c16_i32 dim 1 : vector<32x256xf32>, i32 -> vector<32x256xf32>
    %60 = vector.broadcast %17 : vector<1x256xf32> to vector<32x256xf32>
    %61 = arith.mulf %59, %60 : vector<32x256xf32>
    %62 = arith.addf %61, %47 : vector<32x256xf32>
    %c240_i32 = arith.constant 240 : i32
    %63 = tpu.dynamic_rotate %58 by %c240_i32 dim 1 : vector<32x256xf32>, i32 -> vector<32x256xf32>
    %64 = vector.broadcast %18 : vector<1x256xf32> to vector<32x256xf32>
    %65 = arith.mulf %63, %64 : vector<32x256xf32>
    %66 = arith.addf %62, %65 : vector<32x256xf32>
    %c0_15 = arith.constant 0 : index
    %c0_16 = arith.constant 0 : index
    %67 = vector.load %arg5[%c0_15, %c0_16] : memref<32x1xf32, #tpu.memory_space<vmem>>, vector<32x1xf32>
    %68 = vector.broadcast %67 : vector<32x1xf32> to vector<32x256xf32>
    %69 = arith.addf %66, %68 : vector<32x256xf32>
    %70 = arith.truncf %69 : vector<32x256xf32> to vector<32x256xbf16>
    %c0_17 = arith.constant 0 : index
    %c0_18 = arith.constant 0 : index
    %c0_19 = arith.constant 0 : index
    %71 = vector.load %arg7[%c0_17, %c0_18, %c0_19] : memref<1x32x256xbf16, #tpu.memory_space<vmem>>, vector<1x32x256xbf16>
    %72 = vector.shape_cast %71 : vector<1x32x256xbf16> to vector<32x256xbf16>
    %73 = vector.shape_cast %70 : vector<32x256xbf16> to vector<1x32x256xbf16>
    tpu.vector_store %arg7[%c0_17, %c0_18, %c0_19], %73 {strides = array<i32>} : memref<1x32x256xbf16, #tpu.memory_space<vmem>>, vector<1x32x256xbf16>,
    return
  }
  func.func @transform_0(%arg0: i32) -> (i32, i32, i32) {
    %c0_i32 = arith.constant 0 : i32
    %c0_i32_0 = arith.constant 0 : i32
    %c0_i32_1 = arith.constant 0 : i32
    return %arg0, %c0_i32, %c0_i32_0 : i32, i32, i32
  }
  func.func @transform_1(%arg0: i32) -> (i32, i32) {
    %c0_i32 = arith.constant 0 : i32
    %c0_i32_0 = arith.constant 0 : i32
    %c0_i32_1 = arith.constant 0 : i32
    return %c0_i32, %c0_i32_0 : i32, i32
  }
  func.func @transform_2(%arg0: i32) -> (i32, i32) {
    %c0_i32 = arith.constant 0 : i32
    %c0_i32_0 = arith.constant 0 : i32
    %c0_i32_1 = arith.constant 0 : i32
    return %c0_i32, %c0_i32_0 : i32, i32
  }
  func.func @transform_3(%arg0: i32) -> (i32, i32) {
    %c0_i32 = arith.constant 0 : i32
    %c0_i32_0 = arith.constant 0 : i32
    %c0_i32_1 = arith.constant 0 : i32
    return %c0_i32, %c0_i32_0 : i32, i32
  }
  func.func @transform_4(%arg0: i32) -> (i32, i32) {
    %c0_i32 = arith.constant 0 : i32
    %c0_i32_0 = arith.constant 0 : i32
    %c0_i32_1 = arith.constant 0 : i32
    return %c0_i32, %c0_i32_0 : i32, i32
  }
  func.func @transform_5(%arg0: i32) -> (i32, i32) {
    %c0_i32 = arith.constant 0 : i32
    %c0_i32_0 = arith.constant 0 : i32
    %c0_i32_1 = arith.constant 0 : i32
    return %c0_i32, %c0_i32_0 : i32, i32
  }
  func.func @transform_6(%arg0: i32) -> (i32, i32, i32) {
    %c0_i32 = arith.constant 0 : i32
    %c0_i32_0 = arith.constant 0 : i32
    %c0_i32_1 = arith.constant 0 : i32
    return %arg0, %c0_i32, %c0_i32_0 : i32, i32, i32
  }
}

</mosaic_0001>

<llo_original>
// kernel: scdown_forward.1
$region0: #{scdown_forward.1}
  #allocation0 [shape = 'u32[]', space=smem, size = 0x4, offset = 0x4, fixed_abs, tag = 'smem constant byte address 0x4 - core index']
  #allocation1 [shape = 'u32[72,128]{1,0:T(1,128)}', space=vmem, size = 0x9000, scoped, tag = 'internal scratch']
  %s0 = inlined_call_operand.vmem [shape: f32[2,32,256], index: 0, kind: input, shape index: {}]
  %s1 = inlined_call_operand.vmem [shape: bf16[32,32], index: 1, kind: input, shape index: {}]
  %s2 = inlined_call_operand.vmem [shape: f32[32,1], index: 2, kind: input, shape index: {}]
  %s3 = inlined_call_operand.vmem [shape: f32[32,9], index: 3, kind: input, shape index: {}]
  %s4 = inlined_call_operand.vmem [shape: f32[32,1], index: 4, kind: input, shape index: {}]
  %s5 = inlined_call_operand.vmem [shape: f32[4,256], index: 5, kind: input, shape index: {}]
  %s6 = inlined_call_operand.vmem [shape: bf16[2,32,256], index: 6, kind: output, shape index: {}]
  %s7 = sld [smem:[#allocation0]]
  $region57: #{scdown_forward.1} parent=0
    _
  %s9 = ssub.s32 1, %s7
  %s10 = scalar_select 0, %s9, %s7
  loop: start=0, step=1, limit=4
  $region2: #{scdown_forward.1} parent=0 // loop_pre_header
    _
  $region3: #{scdown_forward.1} parent=0 // loop_header
    %s12 = sphi 0, %s16
    %p13 = scmp.ge.s32.totalorder %s12, 4
    %s22 = sphi 0, %s24
    %s25 = sphi 0, %s22
    %s26 = sphi 0, %s25
    %s42 = sphi 0, %s26
    %s46 = sphi 0, %s46
    %s48 = sphi 0, %s46
    %s49 = sphi 0, %s48
    %s63 = sphi 0, %s49
    %s67 = sphi 0, %s67
    %s69 = sphi 0, %s67
    %s70 = sphi 0, %s69
    %s84 = sphi 0, %s70
    %s88 = sphi 0, %s88
    %s90 = sphi 0, %s88
    %s91 = sphi 0, %s90
    %s105 = sphi 0, %s91
    %s109 = sphi 0, %s109
    %s111 = sphi 0, %s109
    %s112 = sphi 0, %s111
    %s126 = sphi 0, %s112
    %s130 = sphi 0, %s130
    %s132 = sphi 0, %s130
    %s133 = sphi 0, %s132
    %s147 = sphi 0, %s133
    %s153 = sphi 0, %s155
    %s156 = sphi 0, %s153
    %s157 = sphi 0, %s156
    %s173 = sphi 0, %s157
  $region4: #{scdown_forward.1} parent=0 // loop_header_branch
    %15 = sbr.rel (%p13) target = $region8
  $region5: #{scdown_forward.1} parent=0 // loop_body
    %s17 = ssub.s32 %s12, 1
    %s18 = ssub.s32 %s12, 2
    %s19 = sadd.s32 %s12, 1
    %s20 = ssub.s32 %s12, %s19
    %p21 = scmp.eq.s32.totalorder %s20, 0
    %s23 = sadd.s32 %s22, 1
    %s24 = scalar_select %p21, %s22, %s23
    %p27 = pneg %p21
    %p28 = scmp.eq.s32.totalorder %s12, 1
    %p29 = por %p27, %p28
    %p30 = scmp.ne.s32.totalorder %s22, %s25
    %p31 = scmp.eq.s32.totalorder %s12, 0
    %p32 = por %p30, %p31
    %p33 = scmp.ne.s32.totalorder %s22, %s25
    %p34 = scmp.eq.s32.totalorder %s17, 1
    %p35 = por %p33, %p34
    %p36 = scmp.ne.s32.totalorder %s25, %s26
    %p37 = scmp.eq.s32.totalorder %s17, 0
    %p38 = por %p36, %p37
    %p39 = scmp.ne.s32.totalorder %s25, %s26
    %p40 = scmp.eq.s32.totalorder %s18, 1
    %p41 = por %p39, %p40
    %p43 = scmp.ne.s32.totalorder %s26, %s42
    %p44 = scmp.eq.s32.totalorder %s18, 0
    %p45 = por %p43, %p44
    %s47 = sadd.s32 %s46, 1
    %p50 = scmp.eq.s32.totalorder %s12, 1
    %p51 = scmp.ne.s32.totalorder %s46, %s48
    %p52 = scmp.eq.s32.totalorder %s12, 0
    %p53 = por %p51, %p52
    %p54 = scmp.ne.s32.totalorder %s46, %s48
    %p55 = scmp.eq.s32.totalorder %s17, 1
    %p56 = por %p54, %p55
    %p57 = scmp.ne.s32.totalorder %s48, %s49
    %p58 = scmp.eq.s32.totalorder %s17, 0
    %p59 = por %p57, %p58
    %p60 = scmp.ne.s32.totalorder %s48, %s49
    %p61 = scmp.eq.s32.totalorder %s18, 1
    %p62 = por %p60, %p61
    %p64 = scmp.ne.s32.totalorder %s49, %s63
    %p65 = scmp.eq.s32.totalorder %s18, 0
    %p66 = por %p64, %p65
    %s68 = sadd.s32 %s67, 1
    %p71 = scmp.eq.s32.totalorder %s12, 1
    %p72 = scmp.ne.s32.totalorder %s67, %s69
    %p73 = scmp.eq.s32.totalorder %s12, 0
    %p74 = por %p72, %p73
    %p75 = scmp.ne.s32.totalorder %s67, %s69
    %p76 = scmp.eq.s32.totalorder %s17, 1
    %p77 = por %p75, %p76
    %p78 = scmp.ne.s32.totalorder %s69, %s70
    %p79 = scmp.eq.s32.totalorder %s17, 0
    %p80 = por %p78, %p79
    %p81 = scmp.ne.s32.totalorder %s69, %s70
    %p82 = scmp.eq.s32.totalorder %s18, 1
    %p83 = por %p81, %p82
    %p85 = scmp.ne.s32.totalorder %s70, %s84
    %p86 = scmp.eq.s32.totalorder %s18, 0
    %p87 = por %p85, %p86
    %s89 = sadd.s32 %s88, 1
    %p92 = scmp.eq.s32.totalorder %s12, 1
    %p93 = scmp.ne.s32.totalorder %s88, %s90
    %p94 = scmp.eq.s32.totalorder %s12, 0
    %p95 = por %p93, %p94
    %p96 = scmp.ne.s32.totalorder %s88, %s90
    %p97 = scmp.eq.s32.totalorder %s17, 1
    %p98 = por %p96, %p97
    %p99 = scmp.ne.s32.totalorder %s90, %s91
    %p100 = scmp.eq.s32.totalorder %s17, 0
    %p101 = por %p99, %p100
    %p102 = scmp.ne.s32.totalorder %s90, %s91
    %p103 = scmp.eq.s32.totalorder %s18, 1
    %p104 = por %p102, %p103
    %p106 = scmp.ne.s32.totalorder %s91, %s105
    %p107 = scmp.eq.s32.totalorder %s18, 0
    %p108 = por %p106, %p107
    %s110 = sadd.s32 %s109, 1
    %p113 = scmp.eq.s32.totalorder %s12, 1
    %p114 = scmp.ne.s32.totalorder %s109, %s111
    %p115 = scmp.eq.s32.totalorder %s12, 0
    %p116 = por %p114, %p115
    %p117 = scmp.ne.s32.totalorder %s109, %s111
    %p118 = scmp.eq.s32.totalorder %s17, 1
    %p119 = por %p117, %p118
    %p120 = scmp.ne.s32.totalorder %s111, %s112
    %p121 = scmp.eq.s32.totalorder %s17, 0
    %p122 = por %p120, %p121
    %p123 = scmp.ne.s32.totalorder %s111, %s112
    %p124 = scmp.eq.s32.totalorder %s18, 1
    %p125 = por %p123, %p124
    %p127 = scmp.ne.s32.totalorder %s112, %s126
    %p128 = scmp.eq.s32.totalorder %s18, 0
    %p129 = por %p127, %p128
    %s131 = sadd.s32 %s130, 1
    %p134 = scmp.eq.s32.totalorder %s12, 1
    %p135 = scmp.ne.s32.totalorder %s130, %s132
    %p136 = scmp.eq.s32.totalorder %s12, 0
    %p137 = por %p135, %p136
    %p138 = scmp.ne.s32.totalorder %s130, %s132
    %p139 = scmp.eq.s32.totalorder %s17, 1
    %p140 = por %p138, %p139
    %p141 = scmp.ne.s32.totalorder %s132, %s133
    %p142 = scmp.eq.s32.totalorder %s17, 0
    %p143 = por %p141, %p142
    %p144 = scmp.ne.s32.totalorder %s132, %s133
    %p145 = scmp.eq.s32.totalorder %s18, 1
    %p146 = por %p144, %p145
    %p148 = scmp.ne.s32.totalorder %s133, %s147
    %p149 = scmp.eq.s32.totalorder %s18, 0
    %p150 = por %p148, %p149
    %s151 = ssub.s32 %s12, %s19
    %p152 = scmp.eq.s32.totalorder %s151, 0
    %s154 = sadd.s32 %s153, 1
    %s155 = scalar_select %p152, %s153, %s154
    %p158 = pneg %p152
    %p159 = scmp.eq.s32.totalorder %s12, 1
    %p160 = por %p158, %p159
    %p161 = scmp.ne.s32.totalorder %s153, %s156
    %p162 = scmp.eq.s32.totalorder %s12, 0
    %p163 = por %p161, %p162
    %p164 = scmp.ne.s32.totalorder %s153, %s156
    %p165 = scmp.eq.s32.totalorder %s17, 1
    %p166 = por %p164, %p165
    %p167 = scmp.ne.s32.totalorder %s156, %s157
    %p168 = scmp.eq.s32.totalorder %s17, 0
    %p169 = por %p167, %p168
    %p170 = scmp.ne.s32.totalorder %s156, %s157
    %p171 = scmp.eq.s32.totalorder %s18, 1
    %p172 = por %p170, %p171
    %p174 = scmp.ne.s32.totalorder %s157, %s173
    %p175 = scmp.eq.s32.totalorder %s18, 0
    %p176 = por %p174, %p175
    %p177 = scmp.le.s32.totalorder 1, %s12
    %p178 = scmp.lt.s32.totalorder %s12, 3
    %p179 = pnand %p177, %p178
    %p180 = pneg %p179
    // Predicated region
    $region9: #{scdown_forward.1} parent=5 // pred_check
      _
    $region10: #{scdown_forward.1} parent=5 // pred_check_branch
      %182 = sbr.rel (%p179) target = $region12
    $region11: #{scdown_forward.1} parent=5 // pred_region
      %s183 = ssub.s32 %s12, 1
      // Predicated region
      $region13: #{scdown_forward.1} parent=11 // pred_check
        %p184 = pneg %p59
      $region14: #{scdown_forward.1} parent=11 // pred_check_branch
        %186 = sbr.rel (%p184) target = $region16
      $region15: #{scdown_forward.1} parent=11 // pred_region
        _
      $region16: #{scdown_forward.1} parent=11 // pred_fallthru
        _
      // Predicated region
      $region17: #{scdown_forward.1} parent=11 // pred_check
        %p187 = pneg %p80
      $region18: #{scdown_forward.1} parent=11 // pred_check_branch
        %189 = sbr.rel (%p187) target = $region20
      $region19: #{scdown_forward.1} parent=11 // pred_region
        _
      $region20: #{scdown_forward.1} parent=11 // pred_fallthru
        _
      // Predicated region
      $region21: #{scdown_forward.1} parent=11 // pred_check
        %p190 = pneg %p101
      $region22: #{scdown_forward.1} parent=11 // pred_check_branch
        %192 = sbr.rel (%p190) target = $region24
      $region23: #{scdown_forward.1} parent=11 // pred_region
        _
      $region24: #{scdown_forward.1} parent=11 // pred_fallthru
        _
      // Predicated region
      $region25: #{scdown_forward.1} parent=11 // pred_check
        %p193 = pneg %p122
      $region26: #{scdown_forward.1} parent=11 // pred_check_branch
        %195 = sbr.rel (%p193) target = $region28
      $region27: #{scdown_forward.1} parent=11 // pred_region
        _
      $region28: #{scdown_forward.1} parent=11 // pred_fallthru
        _
      // Predicated region
      $region29: #{scdown_forward.1} parent=11 // pred_check
        %p196 = pneg %p143
      $region30: #{scdown_forward.1} parent=11 // pred_check_branch
        %198 = sbr.rel (%p196) target = $region32
      $region31: #{scdown_forward.1} parent=11 // pred_region
        _
      $region32: #{scdown_forward.1} parent=11 // pred_fallthru
        _
    $region12: #{scdown_forward.1} parent=5 // pred_fallthru
      _
    %p199 = scmp.lt.s32.totalorder %s12, 2
    // Predicated region
    $region33: #{scdown_forward.1} parent=5 // pred_check
      %p200 = pneg %p199
    $region34: #{scdown_forward.1} parent=5 // pred_check_branch
      %202 = sbr.rel (%p200) target = $region36
    $region35: #{scdown_forward.1} parent=5 // pred_region
      // Predicated region
      $region37: #{scdown_forward.1} parent=35 // pred_check
        %p203 = pneg %p32
      $region38: #{scdown_forward.1} parent=35 // pred_check_branch
        %205 = sbr.rel (%p203) target = $region40
      $region39: #{scdown_forward.1} parent=35 // pred_region
        %p206 = scmp.lt.s32.totalorder %s12, 1
        %s207 = scalar_select %p206, %s12, 1
        %s208 = smul.addr %s207, 8
        %s209 = smul.addr %s208, 8
        %s210 = scalar_lea.vmem %s0, %s209
      $region40: #{scdown_forward.1} parent=35 // pred_fallthru
        _
    $region36: #{scdown_forward.1} parent=5 // pred_fallthru
      _
    %p211 = scmp.le.s32.totalorder 1, %s12
    %p212 = scmp.lt.s32.totalorder %s12, 3
    %p213 = pnand %p211, %p212
    %p214 = pneg %p213
    // Predicated region
    $region41: #{scdown_forward.1} parent=5 // pred_check
      _
    $region42: #{scdown_forward.1} parent=5 // pred_check_branch
      %216 = sbr.rel (%p213) target = $region44
    $region43: #{scdown_forward.1} parent=5 // pred_region
      %s217 = ssub.s32 %s12, 1
      %p218 = scmp.lt.s32.totalorder %s17, 1
      %s219 = scalar_select %p218, %s17, 1
      %s220 = smul.addr %s219, 8
      %s221 = smul.addr %s220, 8
      %s222 = scalar_lea.vmem %s0, %s221
      %p223 = pneg %p38
      %p224 = pneg %p35
      %p225 = pneg %p59
      %p226 = pneg %p56
      %p227 = pneg %p80
      %p228 = pneg %p77
      %p229 = pneg %p101
      %p230 = pneg %p98
      %p231 = pneg %p122
      %p232 = pneg %p119
      %p233 = pneg %p143
      %p234 = pneg %p140
      %p235 = pneg %p169
      %p236 = pneg %p166
      %p237 = scmp.lt.s32.totalorder %s17, 1
      %s238 = scalar_select %p237, %s17, 1
      %s239 = smul.addr %s238, 8
      %s240 = smul.addr %s239, 4
      %s241 = scalar_lea.vmem %s6, %s240
      %p242 = scmp.lt.s32.totalorder %s17, 1
      %s243 = scalar_select %p242, %s17, 1
      %s244 = smul.addr %s243, 8
      %s245 = smul.addr %s244, 8
      %s246 = scalar_lea.vmem %s0, %s245
      %p247 = scmp.lt.s32.totalorder %s17, 1
      %s248 = scalar_select %p247, %s17, 1
      %s249 = smul.addr %s248, 8
      %s250 = smul.addr %s249, 4
      %s251 = scalar_lea.vmem %s6, %s250
      %v253 = vld [vmem:[%s246] sm:$0xff]
      %v254 = vld [vmem:[%s246 + $0x8] sm:$0xff]
      %v255 = vld [vmem:[%s246 + $0x10] sm:$0xff]
      %v256 = vld [vmem:[%s246 + $0x18] sm:$0xff]
      %v257 = vld [vmem:[%s246 + $0x20] sm:$0xff]
      %v258 = vld [vmem:[%s246 + $0x28] sm:$0xff]
      %v259 = vld [vmem:[%s246 + $0x30] sm:$0xff]
      %v260 = vld [vmem:[%s246 + $0x38] sm:$0xff]
      %v261 = vpack.c.bf16 %v255, %v253
      %v262 = vpack.c.bf16 %v256, %v254
      %v263 = vpack.c.bf16 %v259, %v257
      %v264 = vpack.c.bf16 %v260, %v258
      %v265 = vld [vmem:[%s1] sm:$0xf]
      %v266 = vld [vmem:[%s1 + $0x4] sm:$0xf]
      %v267 = vld [vmem:[%s1 + $0x8] sm:$0xf]
      %v268 = vld [vmem:[%s1 + $0xc] sm:$0xf]
      %v269 = vld [vmem:[%s2] sm:$0xff]
      %v270 = vld [vmem:[%s2 + $0x8] sm:$0xff]
      %v271 = vld [vmem:[%s2 + $0x10] sm:$0xff]
      %v272 = vld [vmem:[%s2 + $0x18] sm:$0xff]
      %274 = vset.pattern.permute.xlu0 0
      %275 = vperm.xlu0 %274, %v269
      %v276 = vpop.permute.xlu0 %275
      %279 = vset.pattern.permute.xlu0 0
      %280 = vperm.xlu0 %279, %v270
      %v281 = vpop.permute.xlu0 %280
      %284 = vset.pattern.permute.xlu0 0
      %285 = vperm.xlu0 %284, %v271
      %v286 = vpop.permute.xlu0 %285
      %289 = vset.pattern.permute.xlu0 0
      %290 = vperm.xlu0 %289, %v272
      %v291 = vpop.permute.xlu0 %290
      %v297 = vunpack.c.l.b16 %v265
      %v298 = vunpack.c.l.b16 %v266
      %v299 = vunpack.c.l.b16 %v267
      %v300 = vunpack.c.l.b16 %v268
      %v301 = vpack.c.b16 %v298, %v297
      %v302 = vpack.c.b16 %v300, %v299
      %vm303 = vcmask 261120
      %v305 = vsel %vm303, %v301, 0
      %v308 = vsel %vm303, %v302, 0
      %310 = vmatpush.bf16.msra.mxu0 0
      %311 = vmatpush.bf16.msra.mxu0 0
      %312 = vmatpush.bf16.msra.mxu0 0
      %313 = vmatpush.bf16.msra.mxu0 0
      %314 = vmatpush.bf16.msra.mxu0 0
      %315 = vmatpush.bf16.msra.mxu0 0
      %316 = vmatpush.bf16.msra.mxu0 %v263
      %317 = vmatpush.bf16.msra.mxu0 %v261
      %318 = vmatmul.bf16.gmra.mxu0 %v305
      %v319 = vpop.f32.mrf.mxu0
      %v320 = vadd.f32 %v276, %v319
      %v321 = vpop.f32.mrf.mxu0
      %v322 = vadd.f32 %v281, %v321
      %323 = vmatmul.bf16.gmra.mxu0 %v308
      %v324 = vpop.f32.mrf.mxu0
      %v325 = vadd.f32 %v286, %v324
      %v326 = vpop.f32.mrf.mxu0
      %v327 = vadd.f32 %v291, %v326
      %328 = vdwg.mxu0
      %329 = vmatpush.bf16.msra.mxu0 0
      %330 = vmatpush.bf16.msra.mxu0 0
      %331 = vmatpush.bf16.msra.mxu0 0
      %332 = vmatpush.bf16.msra.mxu0 0
      %333 = vmatpush.bf16.msra.mxu0 0
      %334 = vmatpush.bf16.msra.mxu0 0
      %335 = vmatpush.bf16.msra.mxu0 %v264
      %336 = vmatpush.bf16.msra.mxu0 %v262
      %337 = vmatmul.bf16.gmra.mxu0 %v305
      %v338 = vpop.f32.mrf.mxu0
      %v339 = vadd.f32 %v276, %v338
      %v340 = vpop.f32.mrf.mxu0
      %v341 = vadd.f32 %v281, %v340
      %342 = vmatmul.bf16.gmra.mxu0 %v308
      %v343 = vpop.f32.mrf.mxu0
      %v344 = vadd.f32 %v286, %v343
      %v345 = vpop.f32.mrf.mxu0
      %v346 = vadd.f32 %v291, %v345
      %347 = vdwg.mxu0
      %v348 = vsub.f32 0.0, %v320
      %v349 = vsub.f32 0.0, %v339
      %v350 = vsub.f32 0.0, %v322
      %v351 = vsub.f32 0.0, %v341
      %v352 = vsub.f32 0.0, %v325
      %v353 = vsub.f32 0.0, %v344
      %v354 = vsub.f32 0.0, %v327
      %v355 = vsub.f32 0.0, %v346
      %v356 = vmul.f32 %v348, 1.442695
      %v357 = vpow.pop %v356
      %v358 = vmul.f32 %v349, 1.442695
      %v359 = vpow.pop %v358
      %v360 = vmul.f32 %v350, 1.442695
      %v361 = vpow.pop %v360
      %v362 = vmul.f32 %v351, 1.442695
      %v363 = vpow.pop %v362
      %v364 = vmul.f32 %v352, 1.442695
      %v365 = vpow.pop %v364
      %v366 = vmul.f32 %v353, 1.442695
      %v367 = vpow.pop %v366
      %v368 = vmul.f32 %v354, 1.442695
      %v369 = vpow.pop %v368
      %v370 = vmul.f32 %v355, 1.442695
      %v371 = vpow.pop %v370
      %v372 = vadd.f32 %v357, 1.0
      %v373 = vadd.f32 %v359, 1.0
      %v374 = vadd.f32 %v361, 1.0
      %v375 = vadd.f32 %v363, 1.0
      %v376 = vadd.f32 %v365, 1.0
      %v377 = vadd.f32 %v367, 1.0
      %v378 = vadd.f32 %v369, 1.0
      %v379 = vadd.f32 %v371, 1.0
      %v380 = vrcp.pop %v372
      %v381 = vrcp.pop %v373
      %v382 = vrcp.pop %v374
      %v383 = vrcp.pop %v375
      %v384 = vrcp.pop %v376
      %v385 = vrcp.pop %v377
      %v386 = vrcp.pop %v378
      %v387 = vrcp.pop %v379
      %v388 = vmul.f32 %v320, %v380
      %v389 = vmul.f32 %v339, %v381
      %v390 = vmul.f32 %v322, %v382
      %v391 = vmul.f32 %v341, %v383
      %v392 = vmul.f32 %v325, %v384
      %v393 = vmul.f32 %v344, %v385
      %v394 = vmul.f32 %v327, %v386
      %v395 = vmul.f32 %v346, %v387
      %v396 = vld [vmem:[%s5] ss:$4 sm:$0x3]
      %s397 = scalar_lea.vmem %s5, 1
      %v398 = vld [vmem:[%s397] ss:$4 sm:$0x3]
      %s399 = scalar_lea.vmem %s5, 2
      %v400 = vld [vmem:[%s399] ss:$4 sm:$0x3]
      %s401 = scalar_lea.vmem %s5, 3
      %v402 = vld [vmem:[%s401] ss:$4 sm:$0x3]
      %403 = vrot.lane.b32.xlu0 %v388, 1
      %v404 = vpop.permute.xlu0 %403
      %405 = vrot.lane.b32.xlu0 %v390, 1
      %v406 = vpop.permute.xlu0 %405
      %407 = vrot.lane.b32.xlu0 %v392, 1
      %v408 = vpop.permute.xlu0 %407
      %409 = vrot.lane.b32.xlu0 %v394, 1
      %v410 = vpop.permute.xlu0 %409
      %411 = vrot.lane.b32.xlu0 %v389, 1
      %v412 = vpop.permute.xlu0 %411
      %413 = vrot.lane.b32.xlu0 %v391, 1
      %v414 = vpop.permute.xlu0 %413
      %415 = vrot.lane.b32.xlu0 %v393, 1
      %v416 = vpop.permute.xlu0 %415
      %417 = vrot.lane.b32.xlu0 %v395, 1
      %v418 = vpop.permute.xlu0 %417
      %v419 = vlaneseq
      %v420 = vand.u32 %v419, 127
      %vm421 = vcmp.lt.s32.totalorder %v420, 1
      %v422 = vsel %vm421, %v404, %v412
      %v423 = vsel %vm421, %v406, %v414
      %v424 = vsel %vm421, %v408, %v416
      %v425 = vsel %vm421, %v410, %v418
      %v426 = vsel %vm421, %v412, %v404
      %v427 = vsel %vm421, %v414, %v406
      %v428 = vsel %vm421, %v416, %v408
      %v429 = vsel %vm421, %v418, %v410
      %v431 = vperm.slane %v396, 0
      %v432 = vperm.slane %v396, 1
      %v435 = vmul.f32 %v426, %v431
      %v436 = vmul.f32 %v422, %v432
      %v437 = vmul.f32 %v427, %v431
      %v438 = vmul.f32 %v423, %v432
      %v439 = vmul.f32 %v428, %v431
      %v440 = vmul.f32 %v424, %v432
      %v441 = vmul.f32 %v429, %v431
      %v442 = vmul.f32 %v425, %v432
      %443 = vrot.lane.b32.xlu0 %v388, 127
      %v444 = vpop.permute.xlu0 %443
      %445 = vrot.lane.b32.xlu0 %v390, 127
      %v446 = vpop.permute.xlu0 %445
      %447 = vrot.lane.b32.xlu0 %v392, 127
      %v448 = vpop.permute.xlu0 %447
      %449 = vrot.lane.b32.xlu0 %v394, 127
      %v450 = vpop.permute.xlu0 %449
      %451 = vrot.lane.b32.xlu0 %v389, 127
      %v452 = vpop.permute.xlu0 %451
      %453 = vrot.lane.b32.xlu0 %v391, 127
      %v454 = vpop.permute.xlu0 %453
      %455 = vrot.lane.b32.xlu0 %v393, 127
      %v456 = vpop.permute.xlu0 %455
      %457 = vrot.lane.b32.xlu0 %v395, 127
      %v458 = vpop.permute.xlu0 %457
      %vm459 = vcmp.lt.s32.totalorder %v420, 127
      %v460 = vsel %vm459, %v444, %v452
      %v461 = vsel %vm459, %v446, %v454
      %v462 = vsel %vm459, %v448, %v456
      %v463 = vsel %vm459, %v450, %v458
      %v464 = vsel %vm459, %v452, %v444
      %v465 = vsel %vm459, %v454, %v446
      %v466 = vsel %vm459, %v456, %v448
      %v467 = vsel %vm459, %v458, %v450
      %v469 = vperm.slane %v398, 0
      %v470 = vperm.slane %v398, 1
      %v473 = vmul.f32 %v460, %v469
      %v474 = vmul.f32 %v464, %v470
      %v475 = vmul.f32 %v461, %v469
      %v476 = vmul.f32 %v465, %v470
      %v477 = vmul.f32 %v462, %v469
      %v478 = vmul.f32 %v466, %v470
      %v479 = vmul.f32 %v463, %v469
      %v480 = vmul.f32 %v467, %v470
      %v481 = vld [vmem:[%s3] sm:$0xff]
      %v482 = vld [vmem:[%s3 + $0x8] sm:$0xff]
      %v483 = vld [vmem:[%s3 + $0x10] sm:$0xff]
      %v484 = vld [vmem:[%s3 + $0x18] sm:$0xff]
      %486 = vset.pattern.permute.xlu0 0
      %487 = vperm.xlu0 %486, %v481
      %v488 = vpop.permute.xlu0 %487
      %491 = vset.pattern.permute.xlu0 0
      %492 = vperm.xlu0 %491, %v482
      %v493 = vpop.permute.xlu0 %492
      %496 = vset.pattern.permute.xlu0 0
      %497 = vperm.xlu0 %496, %v483
      %v498 = vpop.permute.xlu0 %497
      %501 = vset.pattern.permute.xlu0 0
      %502 = vperm.xlu0 %501, %v484
      %v503 = vpop.permute.xlu0 %502
      %v505 = vmul.f32 %v488, %v435
      %v506 = vmul.f32 %v488, %v436
      %v507 = vmul.f32 %v493, %v437
      %v508 = vmul.f32 %v493, %v438
      %v509 = vmul.f32 %v498, %v439
      %v510 = vmul.f32 %v498, %v440
      %v511 = vmul.f32 %v503, %v441
      %v512 = vmul.f32 %v503, %v442
      %513 = vset.pattern.permute.xlu0 1
      %514 = vperm.xlu0 %513, %v481
      %v515 = vpop.permute.xlu0 %514
      %517 = vset.pattern.permute.xlu0 1
      %518 = vperm.xlu0 %517, %v482
      %v519 = vpop.permute.xlu0 %518
      %521 = vset.pattern.permute.xlu0 1
      %522 = vperm.xlu0 %521, %v483
      %v523 = vpop.permute.xlu0 %522
      %525 = vset.pattern.permute.xlu0 1
      %526 = vperm.xlu0 %525, %v484
      %v527 = vpop.permute.xlu0 %526
      %v529 = vmul.f32 %v515, %v388
      %v530 = vmul.f32 %v515, %v389
      %v531 = vmul.f32 %v519, %v390
      %v532 = vmul.f32 %v519, %v391
      %v533 = vmul.f32 %v523, %v392
      %v534 = vmul.f32 %v523, %v393
      %v535 = vmul.f32 %v527, %v394
      %v536 = vmul.f32 %v527, %v395
      %v537 = vadd.f32 %v505, %v529
      %v538 = vadd.f32 %v506, %v530
      %v539 = vadd.f32 %v507, %v531
      %v540 = vadd.f32 %v508, %v532
      %v541 = vadd.f32 %v509, %v533
      %v542 = vadd.f32 %v510, %v534
      %v543 = vadd.f32 %v511, %v535
      %v544 = vadd.f32 %v512, %v536
      %545 = vset.pattern.permute.xlu0 2
      %546 = vperm.xlu0 %545, %v481
      %v547 = vpop.permute.xlu0 %546
      %549 = vset.pattern.permute.xlu0 2
      %550 = vperm.xlu0 %549, %v482
      %v551 = vpop.permute.xlu0 %550
      %553 = vset.pattern.permute.xlu0 2
      %554 = vperm.xlu0 %553, %v483
      %v555 = vpop.permute.xlu0 %554
      %557 = vset.pattern.permute.xlu0 2
      %558 = vperm.xlu0 %557, %v484
      %v559 = vpop.permute.xlu0 %558
      %v561 = vmul.f32 %v547, %v473
      %v562 = vmul.f32 %v547, %v474
      %v563 = vmul.f32 %v551, %v475
      %v564 = vmul.f32 %v551, %v476
      %v565 = vmul.f32 %v555, %v477
      %v566 = vmul.f32 %v555, %v478
      %v567 = vmul.f32 %v559, %v479
      %v568 = vmul.f32 %v559, %v480
      %v569 = vadd.f32 %v537, %v561
      %v570 = vadd.f32 %v538, %v562
      %v571 = vadd.f32 %v539, %v563
      %v572 = vadd.f32 %v540, %v564
      %v573 = vadd.f32 %v541, %v565
      %v574 = vadd.f32 %v542, %v566
      %v575 = vadd.f32 %v543, %v567
      %v576 = vadd.f32 %v544, %v568
      %577 = vset.pattern.permute.xlu0 3
      %578 = vperm.xlu0 %577, %v481
      %v579 = vpop.permute.xlu0 %578
      %581 = vset.pattern.permute.xlu0 3
      %582 = vperm.xlu0 %581, %v482
      %v583 = vpop.permute.xlu0 %582
      %585 = vset.pattern.permute.xlu0 3
      %586 = vperm.xlu0 %585, %v483
      %v587 = vpop.permute.xlu0 %586
      %589 = vset.pattern.permute.xlu0 3
      %590 = vperm.xlu0 %589, %v484
      %v591 = vpop.permute.xlu0 %590
      %v593 = vmul.f32 %v579, %v435
      %v594 = vmul.f32 %v579, %v436
      %v595 = vmul.f32 %v583, %v437
      %v596 = vmul.f32 %v583, %v438
      %v597 = vmul.f32 %v587, %v439
      %v598 = vmul.f32 %v587, %v440
      %v599 = vmul.f32 %v591, %v441
      %v600 = vmul.f32 %v591, %v442
      %601 = vset.pattern.permute.xlu0 4
      %602 = vperm.xlu0 %601, %v481
      %v603 = vpop.permute.xlu0 %602
      %605 = vset.pattern.permute.xlu0 4
      %606 = vperm.xlu0 %605, %v482
      %v607 = vpop.permute.xlu0 %606
      %609 = vset.pattern.permute.xlu0 4
      %610 = vperm.xlu0 %609, %v483
      %v611 = vpop.permute.xlu0 %610
      %613 = vset.pattern.permute.xlu0 4
      %614 = vperm.xlu0 %613, %v484
      %v615 = vpop.permute.xlu0 %614
      %v617 = vmul.f32 %v603, %v388
      %v618 = vmul.f32 %v603, %v389
      %v619 = vmul.f32 %v607, %v390
      %v620 = vmul.f32 %v607, %v391
      %v621 = vmul.f32 %v611, %v392
      %v622 = vmul.f32 %v611, %v393
      %v623 = vmul.f32 %v615, %v394
      %v624 = vmul.f32 %v615, %v395
      %v625 = vadd.f32 %v593, %v617
      %v626 = vadd.f32 %v594, %v618
      %v627 = vadd.f32 %v595, %v619
      %v628 = vadd.f32 %v596, %v620
      %v629 = vadd.f32 %v597, %v621
      %v630 = vadd.f32 %v598, %v622
      %v631 = vadd.f32 %v599, %v623
      %v632 = vadd.f32 %v600, %v624
      %633 = vset.pattern.permute.xlu0 5
      %634 = vperm.xlu0 %633, %v481
      %v635 = vpop.permute.xlu0 %634
      %637 = vset.pattern.permute.xlu0 5
      %638 = vperm.xlu0 %637, %v482
      %v639 = vpop.permute.xlu0 %638
      %641 = vset.pattern.permute.xlu0 5
      %642 = vperm.xlu0 %641, %v483
      %v643 = vpop.permute.xlu0 %642
      %645 = vset.pattern.permute.xlu0 5
      %646 = vperm.xlu0 %645, %v484
      %v647 = vpop.permute.xlu0 %646
      %v649 = vmul.f32 %v635, %v473
      %v650 = vmul.f32 %v635, %v474
      %v651 = vmul.f32 %v639, %v475
      %v652 = vmul.f32 %v639, %v476
      %v653 = vmul.f32 %v643, %v477
      %v654 = vmul.f32 %v643, %v478
      %v655 = vmul.f32 %v647, %v479
      %v656 = vmul.f32 %v647, %v480
      %v657 = vadd.f32 %v625, %v649
      %v658 = vadd.f32 %v626, %v650
      %v659 = vadd.f32 %v627, %v651
      %v660 = vadd.f32 %v628, %v652
      %v661 = vadd.f32 %v629, %v653
      %v662 = vadd.f32 %v630, %v654
      %v663 = vadd.f32 %v631, %v655
      %v664 = vadd.f32 %v632, %v656
      %665 = vset.pattern.permute.xlu0 6
      %666 = vperm.xlu0 %665, %v481
      %v667 = vpop.permute.xlu0 %666
      %669 = vset.pattern.permute.xlu0 6
      %670 = vperm.xlu0 %669, %v482
      %v671 = vpop.permute.xlu0 %670
      %673 = vset.pattern.permute.xlu0 6
      %674 = vperm.xlu0 %673, %v483
      %v675 = vpop.permute.xlu0 %674
      %677 = vset.pattern.permute.xlu0 6
      %678 = vperm.xlu0 %677, %v484
      %v679 = vpop.permute.xlu0 %678
      %v681 = vmul.f32 %v667, %v435
      %v682 = vmul.f32 %v667, %v436
      %v683 = vmul.f32 %v671, %v437
      %v684 = vmul.f32 %v671, %v438
      %v685 = vmul.f32 %v675, %v439
      %v686 = vmul.f32 %v675, %v440
      %v687 = vmul.f32 %v679, %v441
      %v688 = vmul.f32 %v679, %v442
      %689 = vset.pattern.permute.xlu0 7
      %690 = vperm.xlu0 %689, %v481
      %v691 = vpop.permute.xlu0 %690
      %693 = vset.pattern.permute.xlu0 7
      %694 = vperm.xlu0 %693, %v482
      %v695 = vpop.permute.xlu0 %694
      %697 = vset.pattern.permute.xlu0 7
      %698 = vperm.xlu0 %697, %v483
      %v699 = vpop.permute.xlu0 %698
      %701 = vset.pattern.permute.xlu0 7
      %702 = vperm.xlu0 %701, %v484
      %v703 = vpop.permute.xlu0 %702
      %v705 = vmul.f32 %v691, %v388
      %v706 = vmul.f32 %v691, %v389
      %v707 = vmul.f32 %v695, %v390
      %v708 = vmul.f32 %v695, %v391
      %v709 = vmul.f32 %v699, %v392
      %v710 = vmul.f32 %v699, %v393
      %v711 = vmul.f32 %v703, %v394
      %v712 = vmul.f32 %v703, %v395
      %v713 = vadd.f32 %v681, %v705
      %v714 = vadd.f32 %v682, %v706
      %v715 = vadd.f32 %v683, %v707
      %v716 = vadd.f32 %v684, %v708
      %v717 = vadd.f32 %v685, %v709
      %v718 = vadd.f32 %v686, %v710
      %v719 = vadd.f32 %v687, %v711
      %v720 = vadd.f32 %v688, %v712
      %721 = vset.pattern.permute.xlu0 8
      %722 = vperm.xlu0 %721, %v481
      %v723 = vpop.permute.xlu0 %722
      %725 = vset.pattern.permute.xlu0 8
      %726 = vperm.xlu0 %725, %v482
      %v727 = vpop.permute.xlu0 %726
      %729 = vset.pattern.permute.xlu0 8
      %730 = vperm.xlu0 %729, %v483
      %v731 = vpop.permute.xlu0 %730
      %733 = vset.pattern.permute.xlu0 8
      %734 = vperm.xlu0 %733, %v484
      %v735 = vpop.permute.xlu0 %734
      %v737 = vmul.f32 %v723, %v473
      %v738 = vmul.f32 %v723, %v474
      %v739 = vmul.f32 %v727, %v475
      %v740 = vmul.f32 %v727, %v476
      %v741 = vmul.f32 %v731, %v477
      %v742 = vmul.f32 %v731, %v478
      %v743 = vmul.f32 %v735, %v479
      %v744 = vmul.f32 %v735, %v480
      %v745 = vadd.f32 %v713, %v737
      %v746 = vadd.f32 %v714, %v738
      %v747 = vadd.f32 %v715, %v739
      %v748 = vadd.f32 %v716, %v740
      %v749 = vadd.f32 %v717, %v741
      %v750 = vadd.f32 %v718, %v742
      %v751 = vadd.f32 %v719, %v743
      %v752 = vadd.f32 %v720, %v744
      %753 = vrot.lane.b32.xlu0 %v569, 16
      %v754 = vpop.permute.xlu0 %753
      %755 = vrot.lane.b32.xlu0 %v571, 16
      %v756 = vpop.permute.xlu0 %755
      %757 = vrot.lane.b32.xlu0 %v573, 16
      %v758 = vpop.permute.xlu0 %757
      %759 = vrot.lane.b32.xlu0 %v575, 16
      %v760 = vpop.permute.xlu0 %759
      %761 = vrot.lane.b32.xlu0 %v570, 16
      %v762 = vpop.permute.xlu0 %761
      %763 = vrot.lane.b32.xlu0 %v572, 16
      %v764 = vpop.permute.xlu0 %763
      %765 = vrot.lane.b32.xlu0 %v574, 16
      %v766 = vpop.permute.xlu0 %765
      %767 = vrot.lane.b32.xlu0 %v576, 16
      %v768 = vpop.permute.xlu0 %767
      %vm769 = vcmp.lt.s32.totalorder %v420, 16
      %v770 = vsel %vm769, %v754, %v762
      %v771 = vsel %vm769, %v756, %v764
      %v772 = vsel %vm769, %v758, %v766
      %v773 = vsel %vm769, %v760, %v768
      %v774 = vsel %vm769, %v762, %v754
      %v775 = vsel %vm769, %v764, %v756
      %v776 = vsel %vm769, %v766, %v758
      %v777 = vsel %vm769, %v768, %v760
      %v779 = vperm.slane %v400, 0
      %v780 = vperm.slane %v400, 1
      %v783 = vmul.f32 %v774, %v779
      %v784 = vmul.f32 %v770, %v780
      %v785 = vmul.f32 %v775, %v779
      %v786 = vmul.f32 %v771, %v780
      %v787 = vmul.f32 %v776, %v779
      %v788 = vmul.f32 %v772, %v780
      %v789 = vmul.f32 %v777, %v779
      %v790 = vmul.f32 %v773, %v780
      %v791 = vadd.f32 %v783, %v657
      %v792 = vadd.f32 %v784, %v658
      %v793 = vadd.f32 %v785, %v659
      %v794 = vadd.f32 %v786, %v660
      %v795 = vadd.f32 %v787, %v661
      %v796 = vadd.f32 %v788, %v662
      %v797 = vadd.f32 %v789, %v663
      %v798 = vadd.f32 %v790, %v664
      %799 = vrot.lane.b32.xlu0 %v745, 112
      %v800 = vpop.permute.xlu0 %799
      %801 = vrot.lane.b32.xlu0 %v747, 112
      %v802 = vpop.permute.xlu0 %801
      %803 = vrot.lane.b32.xlu0 %v749, 112
      %v804 = vpop.permute.xlu0 %803
      %805 = vrot.lane.b32.xlu0 %v751, 112
      %v806 = vpop.permute.xlu0 %805
      %807 = vrot.lane.b32.xlu0 %v746, 112
      %v808 = vpop.permute.xlu0 %807
      %809 = vrot.lane.b32.xlu0 %v748, 112
      %v810 = vpop.permute.xlu0 %809
      %811 = vrot.lane.b32.xlu0 %v750, 112
      %v812 = vpop.permute.xlu0 %811
      %813 = vrot.lane.b32.xlu0 %v752, 112
      %v814 = vpop.permute.xlu0 %813
      %vm815 = vcmp.lt.s32.totalorder %v420, 112
      %v816 = vsel %vm815, %v800, %v808
      %v817 = vsel %vm815, %v802, %v810
      %v818 = vsel %vm815, %v804, %v812
      %v819 = vsel %vm815, %v806, %v814
      %v820 = vsel %vm815, %v808, %v800
      %v821 = vsel %vm815, %v810, %v802
      %v822 = vsel %vm815, %v812, %v804
      %v823 = vsel %vm815, %v814, %v806
      %v825 = vperm.slane %v402, 0
      %v826 = vperm.slane %v402, 1
      %v829 = vmul.f32 %v816, %v825
      %v830 = vmul.f32 %v820, %v826
      %v831 = vmul.f32 %v817, %v825
      %v832 = vmul.f32 %v821, %v826
      %v833 = vmul.f32 %v818, %v825
      %v834 = vmul.f32 %v822, %v826
      %v835 = vmul.f32 %v819, %v825
      %v836 = vmul.f32 %v823, %v826
      %v837 = vadd.f32 %v791, %v829
      %v838 = vadd.f32 %v792, %v830
      %v839 = vadd.f32 %v793, %v831
      %v840 = vadd.f32 %v794, %v832
      %v841 = vadd.f32 %v795, %v833
      %v842 = vadd.f32 %v796, %v834
      %v843 = vadd.f32 %v797, %v835
      %v844 = vadd.f32 %v798, %v836
      %v845 = vld [vmem:[%s4] sm:$0xff]
      %v846 = vld [vmem:[%s4 + $0x8] sm:$0xff]
      %v847 = vld [vmem:[%s4 + $0x10] sm:$0xff]
      %v848 = vld [vmem:[%s4 + $0x18] sm:$0xff]
      %850 = vset.pattern.permute.xlu0 0
      %851 = vperm.xlu0 %850, %v845
      %v852 = vpop.permute.xlu0 %851
      %855 = vset.pattern.permute.xlu0 0
      %856 = vperm.xlu0 %855, %v846
      %v857 = vpop.permute.xlu0 %856
      %860 = vset.pattern.permute.xlu0 0
      %861 = vperm.xlu0 %860, %v847
      %v862 = vpop.permute.xlu0 %861
      %865 = vset.pattern.permute.xlu0 0
      %866 = vperm.xlu0 %865, %v848
      %v867 = vpop.permute.xlu0 %866
      %v869 = vadd.f32 %v837, %v852
      %v870 = vadd.f32 %v838, %v852
      %v871 = vadd.f32 %v839, %v857
      %v872 = vadd.f32 %v840, %v857
      %v873 = vadd.f32 %v841, %v862
      %v874 = vadd.f32 %v842, %v862
      %v875 = vadd.f32 %v843, %v867
      %v876 = vadd.f32 %v844, %v867
      %v877 = vpack.c.bf16 %v870, %v869
      %v878 = vpack.c.bf16 %v872, %v871
      %v879 = vpack.c.bf16 %v874, %v873
      %v880 = vpack.c.bf16 %v876, %v875
      %881 = vst [vmem:[%s251] sm:$0xff] %v877
      %882 = vst [vmem:[%s251 + $0x8] sm:$0xff] %v878
      %883 = vst [vmem:[%s251 + $0x10] sm:$0xff] %v879
      %884 = vst [vmem:[%s251 + $0x18] sm:$0xff] %v880
      %p885 = scmp.lt.s32.totalorder %s17, 1
      %s886 = scalar_select %p885, %s17, 1
      %s887 = smul.addr %s886, 8
      %s888 = smul.addr %s887, 4
      %s889 = scalar_lea.vmem %s6, %s888
      // Predicated region
      $region45: #{scdown_forward.1} parent=43 // pred_check
        %p890 = pneg %p166
      $region46: #{scdown_forward.1} parent=43 // pred_check_branch
        %892 = sbr.rel (%p890) target = $region48
      $region47: #{scdown_forward.1} parent=43 // pred_region
        _
      $region48: #{scdown_forward.1} parent=43 // pred_fallthru
        _
    $region44: #{scdown_forward.1} parent=5 // pred_fallthru
      _
    %p893 = scmp.le.s32.totalorder 2, %s12
    // Predicated region
    $region49: #{scdown_forward.1} parent=5 // pred_check
      %p894 = pneg %p893
    $region50: #{scdown_forward.1} parent=5 // pred_check_branch
      %896 = sbr.rel (%p894) target = $region52
    $region51: #{scdown_forward.1} parent=5 // pred_region
      %s897 = ssub.s32 %s12, 2
      // Predicated region
      $region53: #{scdown_forward.1} parent=51 // pred_check
        %p898 = pneg %p172
      $region54: #{scdown_forward.1} parent=51 // pred_check_branch
        %900 = sbr.rel (%p898) target = $region56
      $region55: #{scdown_forward.1} parent=51 // pred_region
        %p901 = scmp.lt.s32.totalorder %s18, 1
        %s902 = scalar_select %p901, %s18, 1
        %s903 = smul.addr %s902, 8
        %s904 = smul.addr %s903, 4
        %s905 = scalar_lea.vmem %s6, %s904
      $region56: #{scdown_forward.1} parent=51 // pred_fallthru
        _
    $region52: #{scdown_forward.1} parent=5 // pred_fallthru
      _
  $region6: #{scdown_forward.1} parent=0 // loop_footer
    %s16 = sadd.s32 1, %s12
  $region7: #{scdown_forward.1} parent=0 // loop_footer_branch
    %11 = sbr.rel target = $region3
  $region8: #{scdown_forward.1} parent=0 // loop_exit
    _

</llo_original>
